<compile_context>
chip_gen: v7x
topology: tpu7x:2x2x1
jax: 0.10.0
libtpu: 0.0.40
codegen_flags: <defaults>
</compile_context>

<pallas_src>
import functools

import jax
import jax.numpy as jnp
from jax.experimental import pallas as pl
from jax.experimental.pallas import tpu as pltpu


_VMEM_LIMIT = 48 * 1024 * 1024  # fits under v7x's 64 MiB physical VMEM per TC


def _fit_tile(dim, target, align):
    """Largest `align`-multiple <= target that divides dim, else full dim."""
    if dim <= target:
        return dim
    t = (target // align) * align
    while t >= align:
        if dim % t == 0:
            return t
        t -= align
    return dim


# ----------------------------------------------------------------------------
# Kernels
# ----------------------------------------------------------------------------

def _linear_kernel(x_ref, w_ref, b_ref, o_ref, acc_ref):
    # x: (tm, tk) f32, w: (tk, tn) bf16 (pre-transposed [Din, Dout]),
    # b: (1, tn) f32, o: (tm, tn) f32, acc: f32 scratch resident over K axis.
    @pl.when(pl.program_id(2) == 0)
    def _():
        acc_ref[...] = jnp.zeros_like(acc_ref)

    acc_ref[...] += jnp.dot(x_ref[...].astype(jnp.bfloat16), w_ref[...],
                            preferred_element_type=jnp.float32)

    @pl.when(pl.program_id(2) == pl.num_programs(2) - 1)
    def _():
        o_ref[...] = acc_ref[...] + b_ref[...]


def _ffn_kernel(x_ref, w1_ref, b1_ref, w2_ref, b2_ref, s_ref, o_ref):
    # Fused: relu(x @ W1 + b1) @ W2 + b2, scaled per-token by s (MoE gate sum,
    # ones for dense FFN layers).  W1/W2 blocks are VMEM-resident (index 0).
    x = x_ref[...].astype(jnp.bfloat16)
    h = jnp.dot(x, w1_ref[...], preferred_element_type=jnp.float32) + b1_ref[...]
    h = jnp.maximum(h, 0.0)
    y = (jnp.dot(h.astype(jnp.bfloat16), w2_ref[...],
                 preferred_element_type=jnp.float32) + b2_ref[...])
    o_ref[...] = y * s_ref[...]


def _ln_core(x, g_ref, b_ref, o_ref):
    mean = jnp.mean(x, axis=-1, keepdims=True)
    var = jnp.mean(jnp.square(x - mean), axis=-1, keepdims=True)
    o_ref[...] = (x - mean) * jax.lax.rsqrt(var + 1e-5) * g_ref[...] + b_ref[...]


def _ln_kernel(x_ref, g_ref, b_ref, o_ref):
    _ln_core(x_ref[...], g_ref, b_ref, o_ref)


def _add_ln_kernel(x_ref, r_ref, g_ref, b_ref, o_ref):
    # Residual add fused into the layernorm (saves one full HBM round trip).
    _ln_core(x_ref[...] + r_ref[...], g_ref, b_ref, o_ref)


def _flash_attn_kernel(q_ref, k_ref, v_ref, o_ref, m_ref, l_ref, acc_ref, *,
                       scale):
    # q: (1, tq, Dh) bf16; k/v: (1, tk, Dh) bf16; o: (1, tq, Dh) f32.
    # Online softmax with running max / denom in VMEM scratch; causal mask
    # built in-kernel from iota; fully-masked KV tiles skipped.
    tq = q_ref.shape[1]
    tk = k_ref.shape[1]
    qi = pl.program_id(1)
    ki = pl.program_id(2)

    @pl.when(ki == 0)
    def _init():
        m_ref[...] = jnp.full_like(m_ref, -1e30)
        l_ref[...] = jnp.zeros_like(l_ref)
        acc_ref[...] = jnp.zeros_like(acc_ref)

    @pl.when(ki * tk <= qi * tq + (tq - 1))   # skip blocks above the diagonal
    def _compute():
        q = q_ref[0]
        k = k_ref[0]
        s = jax.lax.dot_general(q, k, (((1,), (1,)), ((), ())),
                                preferred_element_type=jnp.float32) * scale
        row = qi * tq + jax.lax.broadcasted_iota(jnp.int32, (tq, tk), 0)
        col = ki * tk + jax.lax.broadcasted_iota(jnp.int32, (tq, tk), 1)
        s = jnp.where(col <= row, s, -1e30)

        m_prev = m_ref[...]
        m_new = jnp.maximum(m_prev, jnp.max(s, axis=-1, keepdims=True))
        alpha = jnp.exp(m_prev - m_new)
        p = jnp.exp(s - m_new)
        l_ref[...] = alpha * l_ref[...] + jnp.sum(p, axis=-1, keepdims=True)
        acc_ref[...] = alpha * acc_ref[...] + jnp.dot(
            p.astype(jnp.bfloat16), v_ref[0], preferred_element_type=jnp.float32)
        m_ref[...] = m_new

    @pl.when(ki == pl.num_programs(2) - 1)
    def _finalize():
        o_ref[0] = (acc_ref[...] * pl.reciprocal(l_ref[...], approx=True)
                    ).astype(o_ref.dtype)


# ----------------------------------------------------------------------------
# Kernel wrappers
# ----------------------------------------------------------------------------

def linear(x2d, w_t, b=None):
    """x2d (N, Din) f32 @ w_t (Din, Dout) bf16 + b -> (N, Dout) f32."""
    n, din = x2d.shape
    dout = w_t.shape[1]
    if b is None:
        b = jnp.zeros((dout,), jnp.float32)
    tm = _fit_tile(n, 256, 8)
    tn = _fit_tile(dout, 256, 128)
    tk = _fit_tile(din, 512, 128)
    grid = (n // tm, dout // tn, din // tk)
    return pl.pallas_call(
        _linear_kernel,
        out_shape=jax.ShapeDtypeStruct((n, dout), jnp.float32),
        grid=grid,
        in_specs=[
            pl.BlockSpec((tm, tk), lambda i, j, k: (i, k)),
            pl.BlockSpec((tk, tn), lambda i, j, k: (k, j)),
            pl.BlockSpec((1, tn), lambda i, j, k: (0, j)),
        ],
        out_specs=pl.BlockSpec((tm, tn), lambda i, j, k: (i, j)),
        scratch_shapes=[pltpu.VMEM((tm, tn), jnp.float32)],
        compiler_params=pltpu.CompilerParams(
            dimension_semantics=("parallel", "parallel", "arbitrary"),
            vmem_limit_bytes=_VMEM_LIMIT),
    )(x2d, w_t, b.reshape(1, dout))


def ffn(x2d, w1_t, b1, w2_t, b2, scale=None):
    """Fused (gated) FFN: scale * (relu(x@W1+b1)@W2+b2)."""
    n, d = x2d.shape
    f = w1_t.shape[1]
    if scale is None:
        scale = jnp.ones((n, 1), jnp.float32)
    tm = _fit_tile(n, 256, 8)
    return pl.pallas_call(
        _ffn_kernel,
        out_shape=jax.ShapeDtypeStruct((n, d), jnp.float32),
        grid=(n // tm,),
        in_specs=[
            pl.BlockSpec((tm, d), lambda i: (i, 0)),
            pl.BlockSpec((d, f), lambda i: (0, 0)),   # resident across row tiles
            pl.BlockSpec((1, f), lambda i: (0, 0)),
            pl.BlockSpec((f, d), lambda i: (0, 0)),   # resident across row tiles
            pl.BlockSpec((1, d), lambda i: (0, 0)),
            pl.BlockSpec((tm, 1), lambda i: (i, 0)),
        ],
        out_specs=pl.BlockSpec((tm, d), lambda i: (i, 0)),
        compiler_params=pltpu.CompilerParams(
            dimension_semantics=("parallel",), vmem_limit_bytes=_VMEM_LIMIT),
    )(x2d, w1_t, b1.reshape(1, f), w2_t, b2.reshape(1, d), scale)


def layernorm(x2d, g, b, residual=None):
    n, d = x2d.shape
    tm = _fit_tile(n, 512, 8)
    row_spec = pl.BlockSpec((tm, d), lambda i: (i, 0))
    vec_spec = pl.BlockSpec((1, d), lambda i: (0, 0))
    if residual is None:
        kernel = _ln_kernel
        args = (x2d, g.reshape(1, d), b.reshape(1, d))
        in_specs = [row_spec, vec_spec, vec_spec]
    else:
        kernel = _add_ln_kernel
        args = (x2d, residual, g.reshape(1, d), b.reshape(1, d))
        in_specs = [row_spec, row_spec, vec_spec, vec_spec]
    return pl.pallas_call(
        kernel,
        out_shape=jax.ShapeDtypeStruct((n, d), jnp.float32),
        grid=(n // tm,),
        in_specs=in_specs,
        out_specs=row_spec,
        compiler_params=pltpu.CompilerParams(
            dimension_semantics=("parallel",), vmem_limit_bytes=_VMEM_LIMIT),
    )(*args)


def attention(q, k, v, n_heads):
    """q/k/v: (B, S, D) f32 -> (B*S, D) f32 (causal multi-head attention)."""
    B, S, D = q.shape
    H = n_heads
    Dh = D // H
    scale = 1.0 / (Dh ** 0.5)

    def split_heads(t):
        return (t.astype(jnp.bfloat16)
                 .reshape(B, S, H, Dh).transpose(0, 2, 1, 3).reshape(B * H, S, Dh))

    qh, kh, vh = split_heads(q), split_heads(k), split_heads(v)

    tq = _fit_tile(S, 128, 8)
    tk = _fit_tile(S, 128, 8)
    grid = (B * H, S // tq, S // tk)
    q_spec = pl.BlockSpec((1, tq, Dh), lambda bh, qi, ki: (bh, qi, 0))
    kv_spec = pl.BlockSpec((1, tk, Dh), lambda bh, qi, ki: (bh, ki, 0))

    out = pl.pallas_call(
        functools.partial(_flash_attn_kernel, scale=scale),
        out_shape=jax.ShapeDtypeStruct((B * H, S, Dh), jnp.float32),
        grid=grid,
        in_specs=[q_spec, kv_spec, kv_spec],
        out_specs=pl.BlockSpec((1, tq, Dh), lambda bh, qi, ki: (bh, qi, 0)),
        scratch_shapes=[pltpu.VMEM((tq, 1), jnp.float32),
                        pltpu.VMEM((tq, 1), jnp.float32),
                        pltpu.VMEM((tq, Dh), jnp.float32)],
        compiler_params=pltpu.CompilerParams(
            dimension_semantics=("parallel", "parallel", "arbitrary"),
            vmem_limit_bytes=_VMEM_LIMIT),
    )(qh, kh, vh)

    return out.reshape(B, H, S, Dh).transpose(0, 2, 1, 3).reshape(B * S, D)


# ----------------------------------------------------------------------------
# Model forward (glue in plain JAX, hot paths in Pallas kernels)
# ----------------------------------------------------------------------------

def transformer_block(lp, x):
    B, S, D = x.shape
    N = B * S
    x2 = x.reshape(N, D)
    residual = x2

    # --- multi-head causal self-attention ---
    qkv = linear(x2, lp["w_qkv_t"], lp["b_qkv"])            # (N, 3D) f32
    q, k, v = jnp.split(qkv, 3, axis=-1)
    attn = attention(q.reshape(B, S, D), k.reshape(B, S, D), v.reshape(B, S, D),
                     lp["n_heads"])                          # (N, D)
    attn_out = linear(attn, lp["w_o_t"], lp["b_o"])

    x2 = layernorm(attn_out, lp["ln1_g"], lp["ln1_b"], residual=residual)
    residual = x2

    if lp["use_moe"]:
        E = lp["wg_t"].shape[1]
        logits = linear(x2, lp["wg_t"])                      # (N, E) router
        probs = jax.nn.softmax(logits, axis=-1)
        topv, topi = jax.lax.top_k(probs, lp["top_k"])
        topv = topv / jnp.sum(topv, axis=-1, keepdims=True)  # renormalize top-k
        gates = jnp.sum(
            jax.nn.one_hot(topi, E, dtype=jnp.float32) * topv[..., None], axis=1
        )                                                    # (N, E)
        gsum = jnp.sum(gates, axis=-1, keepdims=True)        # (N, 1) == 1.0
        # All experts share one module in the reference, so the combined MoE
        # output equals (sum of gates) * shared_expert(x): one gated FFN pass.
        y = ffn(x2, lp["e_w1_t"], lp["e_b1"], lp["e_w2_t"], lp["e_b2"],
                scale=gsum)
        importance = jnp.mean(probs, axis=0)
        load = jnp.mean((gates > 0.0).astype(jnp.float32), axis=0)
        aux = E * jnp.sum(importance * load)
    else:
        y = ffn(x2, lp["w1_t"], lp["b1"], lp["w2_t"], lp["b2"])
        aux = 0.0

    out = layernorm(y, lp["ln2_g"], lp["ln2_b"], residual=residual)
    return out.reshape(B, S, D), aux


def moe_transformer_forward(params, input_ids):
    B, S = input_ids.shape
    D = params["tok_emb"].shape[1]

    x = (params["tok_emb"][input_ids] + params["pos_emb"][:S][None]
         ).astype(jnp.float32)

    total_aux = 0.0
    for lp in params["layers"]:
        x, aux = transformer_block(lp, x)
        total_aux = total_aux + aux

    x2 = layernorm(x.reshape(B * S, D), params["lnf_g"], params["lnf_b"])
    logits = linear(x2, params["head_w_t"])                  # bias-free head
    V = params["head_w_t"].shape[1]
    return {"logits": logits.reshape(B, S, V), "aux_loss": total_aux}


# ----------------------------------------------------------------------------
# Deterministic parameter init (mirrors _init_weights: normal(0, 0.02),
# zero bias, LayerNorm ones/zeros).  Linear weights are initialized
# PyTorch-style [out, in], then stored pre-transposed [in, out] in bf16.
# ----------------------------------------------------------------------------

def init_params(key, *, vocab_size, d_model, n_heads, n_layers, d_ff,
                n_experts, top_k, max_seq_len):
    keys = iter(jax.random.split(key, 64))

    def normal(shape):
        return 0.02 * jax.random.normal(next(keys), shape, dtype=jnp.float32)

    def linear_w(din, dout):
        return normal((dout, din)).T.astype(jnp.bfloat16)    # stored [Din, Dout]

    params = {
        "tok_emb": normal((vocab_size, d_model)),
        "pos_emb": normal((max_seq_len, d_model)),
        "lnf_g": jnp.ones((d_model,), jnp.float32),
        "lnf_b": jnp.zeros((d_model,), jnp.float32),
        "head_w_t": linear_w(d_model, vocab_size),
        "layers": [],
    }

    for i in range(n_layers):
        use_moe = (i % 2 == 1)
        lp = {
            "n_heads": n_heads,
            "top_k": top_k,
            "use_moe": use_moe,
            "w_qkv_t": linear_w(d_model, 3 * d_model),
            "b_qkv": jnp.zeros((3 * d_model,), jnp.float32),
            "w_o_t": linear_w(d_model, d_model),
            "b_o": jnp.zeros((d_model,), jnp.float32),
            "ln1_g": jnp.ones((d_model,), jnp.float32),
            "ln1_b": jnp.zeros((d_model,), jnp.float32),
            "ln2_g": jnp.ones((d_model,), jnp.float32),
            "ln2_b": jnp.zeros((d_model,), jnp.float32),
        }
        if use_moe:
            lp["wg_t"] = linear_w(d_model, n_experts)
            # Reference builds [expert]*n_experts from ONE module -> store the
            # shared expert weights exactly once (no E-times HBM replication).
            lp["e_w1_t"] = linear_w(d_model, d_ff)
            lp["e_b1"] = jnp.zeros((d_ff,), jnp.float32)
            lp["e_w2_t"] = linear_w(d_ff, d_model)
            lp["e_b2"] = jnp.zeros((d_model,), jnp.float32)
        else:
            lp["w1_t"] = linear_w(d_model, d_ff)
            lp["b1"] = jnp.zeros((d_ff,), jnp.float32)
            lp["w2_t"] = linear_w(d_ff, d_model)
            lp["b2"] = jnp.zeros((d_model,), jnp.float32)
        params["layers"].append(lp)

    return params


if __name__ == "__main__":
    cfg = dict(
        vocab_size=64, d_model=32, n_heads=4, n_layers=2, d_ff=64,
        n_experts=4, top_k=2, max_seq_len=16,
    )
    root = jax.random.PRNGKey(0)
    pkey, dkey = jax.random.split(root)
    params = init_params(pkey, **cfg)

    B, S = 2, 8
    input_ids = jax.random.randint(dkey, (B, S), 0, cfg["vocab_size"])

    out = moe_transformer_forward(params, input_ids)
    jax.block_until_ready(out["logits"])
    jax.block_until_ready(out["aux_loss"])

    assert out["logits"].shape == (B, S, cfg["vocab_size"])
    assert bool(jnp.all(jnp.isfinite(out["logits"])))
    print("KERNEL_OK")
</pallas_src>

<mosaic_0001>
module attributes {stable_mosaic.version = 11 : i64} {
  func.func @_linear_kernel(%arg0: i32, %arg1: i32, %arg2: i32, %arg3: memref<16x32xf32, #tpu.memory_space<vmem>>, %arg4: memref<32x96xbf16, #tpu.memory_space<vmem>>, %arg5: memref<1x96xf32, #tpu.memory_space<vmem>>, %arg6: memref<16x96xf32, #tpu.memory_space<vmem>>, %arg7: memref<16x96xf32, #tpu.memory_space<vmem>>) attributes {dimension_semantics = [#tpu.dimension_semantics<parallel>, #tpu.dimension_semantics<parallel>, #tpu.dimension_semantics<arbitrary>], iteration_bounds = array<i64: 1, 1, 1>, scalar_prefetch = 0 : i64, scratch_operands = 1 : i64, tpu.core_type = #tpu.core_type<tc>, window_params = [{transform_indices = @transform_0, window_bounds = array<i64: 16, 32>}, {transform_indices = @transform_1, window_bounds = array<i64: 32, 96>}, {transform_indices = @transform_2, window_bounds = array<i64: 1, 96>}, {transform_indices = @transform_3, window_bounds = array<i64: 16, 96>}]} {
    %c0_i32 = arith.constant 0 : i32
    %0 = arith.cmpi eq, %arg2, %c0_i32 : i32
    %1 = arith.extui %0 : i1 to i32
    %c0_i32_0 = arith.constant 0 : i32
    %2 = arith.cmpi ne, %1, %c0_i32_0 : i32
    scf.if %2 {
      %cst_10 = arith.constant 0.000000e+00 : f32
      %13 = vector.broadcast %cst_10 : f32 to vector<16x96xf32>
      %c0_11 = arith.constant 0 : index
      %c0_12 = arith.constant 0 : index
      %14 = vector.load %arg7[%c0_11, %c0_12] : memref<16x96xf32, #tpu.memory_space<vmem>>, vector<16x96xf32>
      tpu.vector_store %arg7[%c0_11, %c0_12], %13 {strides = array<i32>} : memref<16x96xf32, #tpu.memory_space<vmem>>, vector<16x96xf32>,
    } else {
    }
    %c0 = arith.constant 0 : index
    %c0_1 = arith.constant 0 : index
    %3 = vector.load %arg7[%c0, %c0_1] : memref<16x96xf32, #tpu.memory_space<vmem>>, vector<16x96xf32>
    %c0_2 = arith.constant 0 : index
    %c0_3 = arith.constant 0 : index
    %4 = vector.load %arg3[%c0_2, %c0_3] : memref<16x32xf32, #tpu.memory_space<vmem>>, vector<16x32xf32>
    %5 = arith.truncf %4 : vector<16x32xf32> to vector<16x32xbf16>
    %c0_4 = arith.constant 0 : index
    %c0_5 = arith.constant 0 : index
    %6 = vector.load %arg4[%c0_4, %c0_5] : memref<32x96xbf16, #tpu.memory_space<vmem>>, vector<32x96xbf16>
    %cst = arith.constant dense<0.000000e+00> : vector<16x96xf32>
    %7 = tpu.matmul %5, %6, %cst {dimension_numbers = #tpu.dot_dimension_numbers<[1], [0], [0], [1], [0, 0, 1, 1], [], []>} : vector<16x32xbf16>, vector<32x96xbf16>, vector<16x96xf32> -> vector<16x96xf32>
    %8 = arith.addf %3, %7 : vector<16x96xf32>
    %c0_6 = arith.constant 0 : index
    %c0_7 = arith.constant 0 : index
    %9 = vector.load %arg7[%c0_6, %c0_7] : memref<16x96xf32, #tpu.memory_space<vmem>>, vector<16x96xf32>
    tpu.vector_store %arg7[%c0_6, %c0_7], %8 {strides = array<i32>} : memref<16x96xf32, #tpu.memory_space<vmem>>, vector<16x96xf32>,
    %c0_i32_8 = arith.constant 0 : i32
    %10 = arith.cmpi eq, %arg2, %c0_i32_8 : i32
    %11 = arith.extui %10 : i1 to i32
    %c0_i32_9 = arith.constant 0 : i32
    %12 = arith.cmpi ne, %11, %c0_i32_9 : i32
    scf.if %12 {
      %c0_10 = arith.constant 0 : index
      %c0_11 = arith.constant 0 : index
      %13 = vector.load %arg7[%c0_10, %c0_11] : memref<16x96xf32, #tpu.memory_space<vmem>>, vector<16x96xf32>
      %c0_12 = arith.constant 0 : index
      %c0_13 = arith.constant 0 : index
      %14 = vector.load %arg5[%c0_12, %c0_13] : memref<1x96xf32, #tpu.memory_space<vmem>>, vector<1x96xf32>
      %15 = vector.broadcast %14 : vector<1x96xf32> to vector<16x96xf32>
      %16 = arith.addf %13, %15 : vector<16x96xf32>
      %c0_14 = arith.constant 0 : index
      %c0_15 = arith.constant 0 : index
      %17 = vector.load %arg6[%c0_14, %c0_15] : memref<16x96xf32, #tpu.memory_space<vmem>>, vector<16x96xf32>
      tpu.vector_store %arg6[%c0_14, %c0_15], %16 {strides = array<i32>} : memref<16x96xf32, #tpu.memory_space<vmem>>, vector<16x96xf32>,
    } else {
    }
    return
  }
  func.func @transform_0(%arg0: i32, %arg1: i32, %arg2: i32) -> (i32, i32) {
    %c0_i32 = arith.constant 0 : i32
    return %arg0, %arg2 : i32, i32
  }
  func.func @transform_1(%arg0: i32, %arg1: i32, %arg2: i32) -> (i32, i32) {
    %c0_i32 = arith.constant 0 : i32
    return %arg2, %arg1 : i32, i32
  }
  func.func @transform_2(%arg0: i32, %arg1: i32, %arg2: i32) -> (i32, i32) {
    %c0_i32 = arith.constant 0 : i32
    %c0_i32_0 = arith.constant 0 : i32
    return %c0_i32, %arg1 : i32, i32
  }
  func.func @transform_3(%arg0: i32, %arg1: i32, %arg2: i32) -> (i32, i32) {
    %c0_i32 = arith.constant 0 : i32
    return %arg0, %arg1 : i32, i32
  }
}

</mosaic_0001>

<llo_original>
// kernel: tpu_custom_call.1
$region0: #{tpu_custom_call.1}
  #allocation0 [shape = 'u32[]', space=smem, size = 0x4, offset = 0x4, fixed_abs, tag = 'smem constant byte address 0x4 - core index']
  #allocation1 [shape = 'u32[144,128]{1,0:T(1,128)}', space=vmem, size = 0x12000, scoped, tag = 'internal scratch']
  #allocation2 [shape = 'f32[16,96]{1,0:T(8,128)}', space=vmem, size = 0x2000, scoped, tag = 'scratch operand']
  %s0 = inlined_call_operand.hbm [shape: f32[16,32], index: 0, kind: input, shape index: {}]
  %s1 = inlined_call_operand.hbm [shape: bf16[32,96], index: 1, kind: input, shape index: {}]
  %s2 = inlined_call_operand.vmem [shape: f32[1,96], index: 2, kind: input, shape index: {}]
  %s3 = inlined_call_operand.hbm [shape: f32[16,96], index: 3, kind: output, shape index: {}]
  %s4 = sld [smem:[#allocation0]]
  $region38: #{tpu_custom_call.1} parent=0
    _
  %s6 = ssub.s32 1, %s4
  %s7 = scalar_select 0, %s6, %s4
  $region1: #{tpu_custom_call.1} parent=0
    #allocation3 [shape = 'u8[8192]{0}', space=vmem, size = 0x2000, scoped, tag = 'input window, operand 0, single buffered']
    #allocation4 [shape = 's32[1]{0}', space=sflag, size = 0x4, scoped, tag = 'scoped memory for tpu_custom_call.1']
    #allocation5 [shape = 's32[1]{0}', space=sflag, size = 0x4, scoped, tag = 'scoped memory for tpu_custom_call.1']
    #allocation6 [shape = 'u8[8192]{0}', space=vmem, size = 0x2000, scoped, tag = 'input window, operand 1, single buffered']
    #allocation7 [shape = 's32[1]{0}', space=sflag, size = 0x4, scoped, tag = 'scoped memory for tpu_custom_call.1']
    #allocation8 [shape = 'u8[8192]{0}', space=vmem, size = 0x2000, scoped, tag = 'output window, operand 0, single buffered']
    %8 = vsyncpa [#allocation4], 0
    %9 = vsyncpa [#allocation7], 0
    %10 = vsyncpa [#allocation5], 0
    // Predicated region
    $region2: #{tpu_custom_call.1} parent=1 // pred_check
      _
    $region3: #{tpu_custom_call.1} parent=1 // pred_check_branch
      %12 = sbr.rel (0) target = $region5
    $region4: #{tpu_custom_call.1} parent=1 // pred_region
      %s14 = ssub.s32 256, 256
      %15 = vsyncadd [#allocation4], %s14
      %s16 = sshll.u32 [#allocation3], 4
      %s17 = int_to_ptr.vmem [resolvable:$true] %s16
      %22 = dma.hbm_to_vmem [thread:$0]  %s0, 256, %s17, [#allocation4], 128, 128, 8
    $region5: #{tpu_custom_call.1} parent=1 // pred_fallthru
      _
    // Predicated region
    $region6: #{tpu_custom_call.1} parent=1 // pred_check
      _
    $region7: #{tpu_custom_call.1} parent=1 // pred_check_branch
      %24 = sbr.rel (0) target = $region9
    $region8: #{tpu_custom_call.1} parent=1 // pred_region
      %s26 = ssub.s32 256, 256
      %27 = vsyncadd [#allocation7], %s26
      %s28 = sshll.u32 [#allocation6], 4
      %s29 = int_to_ptr.vmem [resolvable:$true] %s28
      %34 = dma.hbm_to_vmem [thread:$0]  %s1, 256, %s29, [#allocation7], 64, 64, 4
    $region9: #{tpu_custom_call.1} parent=1 // pred_fallthru
      _
    // Predicated region
    $region10: #{tpu_custom_call.1} parent=1 // pred_check
      _
    $region11: #{tpu_custom_call.1} parent=1 // pred_check_branch
      %36 = sbr.rel (0) target = $region13
    $region12: #{tpu_custom_call.1} parent=1 // pred_region
      _
    $region13: #{tpu_custom_call.1} parent=1 // pred_fallthru
      _
    // Predicated region
    $region14: #{tpu_custom_call.1} parent=1 // pred_check
      _
    $region15: #{tpu_custom_call.1} parent=1 // pred_check_branch
      %38 = sbr.rel (0) target = $region17
    $region16: #{tpu_custom_call.1} parent=1 // pred_region
      %39 = dma.done [#allocation4], 256
    $region17: #{tpu_custom_call.1} parent=1 // pred_fallthru
      _
    // Predicated region
    $region18: #{tpu_custom_call.1} parent=1 // pred_check
      _
    $region19: #{tpu_custom_call.1} parent=1 // pred_check_branch
      %41 = sbr.rel (0) target = $region21
    $region20: #{tpu_custom_call.1} parent=1 // pred_region
      %42 = dma.done [#allocation7], 256
    $region21: #{tpu_custom_call.1} parent=1 // pred_fallthru
      _
    %p44 = scmp.eq.s32.totalorder 0, 0
    // Predicated region
    $region22: #{tpu_custom_call.1} parent=1 // pred_check
      %p45 = pneg %p44
    $region23: #{tpu_custom_call.1} parent=1 // pred_check_branch
      %47 = sbr.rel (%p45) target = $region25
    $region24: #{tpu_custom_call.1} parent=1 // pred_region
      %vm48 = vcmask 785408
      %49 = vst.msk [vmem:[#allocation2] sm:$0xff] %vm48, 0.0
      %50 = vst.msk [vmem:[#allocation2 + $0x8] sm:$0xff] %vm48, 0.0
    $region25: #{tpu_custom_call.1} parent=1 // pred_fallthru
      _
    %v51 = vld [vmem:[#allocation2] sm:$0xff]
    %v52 = vld [vmem:[#allocation2 + $0x8] sm:$0xff]
    %v53 = vld [vmem:[#allocation3] sm:$0xff]
    %v54 = vld [vmem:[#allocation3 + $0x8] sm:$0xff]
    %v55 = vpack.c.bf16 %v54, %v53
    %v56 = vld [vmem:[#allocation6] sm:$0xf]
    %v57 = vld [vmem:[#allocation6 + $0x4] sm:$0xf]
    %v58 = vld [vmem:[#allocation6 + $0x8] sm:$0xf]
    %v59 = vld [vmem:[#allocation6 + $0xc] sm:$0xf]
    %v64 = vunpack.c.l.b16 %v56
    %v65 = vunpack.c.l.b16 %v57
    %v66 = vunpack.c.l.b16 %v58
    %v67 = vunpack.c.l.b16 %v59
    %v68 = vpack.c.b16 %v65, %v64
    %v69 = vpack.c.b16 %v67, %v66
    %vm72 = vcmask 261120
    %v74 = vsel %vm72, %v55, 0
    %76 = vmatprep.subr.bf16.mxu0 0
    %77 = vmatpush1.bf16.msra.mxu0 %v68
    %78 = vmatprep.subr.bf16.mxu0 0
    %79 = vmatpush1.bf16.msra.mxu0 %v69
    %80 = vmatprep.subr.bf16.mxu0 0
    %81 = vmatpush1.bf16.msra.mxu0 0
    %82 = vmatprep.subr.bf16.mxu0 0
    %83 = vmatpush1.bf16.msra.mxu0 0
    %84 = vmatprep.subr.bf16.mxu0 0
    %85 = vmatpush1.bf16.msra.mxu0 0
    %86 = vmatprep.subr.bf16.mxu0 0
    %87 = vmatpush1.bf16.msra.mxu0 0
    %88 = vmatprep.subr.bf16.mxu0 0
    %89 = vmatpush1.bf16.msra.mxu0 0
    %90 = vmatprep.subr.bf16.mxu0 0
    %91 = vmatpush1.bf16.msra.mxu0 0
    %92 = vmatprep.subr.bf16.mxu0 0
    %93 = vmatpush1.bf16.msra.mxu0 0
    %94 = vmatprep.subr.bf16.mxu0 0
    %95 = vmatpush1.bf16.msra.mxu0 0
    %96 = vmatprep.subr.bf16.mxu0 0
    %97 = vmatpush1.bf16.msra.mxu0 0
    %98 = vmatprep.subr.bf16.mxu0 0
    %99 = vmatpush1.bf16.msra.mxu0 0
    %100 = vmatprep.subr.bf16.mxu0 0
    %101 = vmatpush1.bf16.msra.mxu0 0
    %102 = vmatprep.subr.bf16.mxu0 0
    %103 = vmatpush1.bf16.msra.mxu0 0
    %104 = vmatprep.subr.bf16.mxu0 0
    %105 = vmatpush1.bf16.msra.mxu0 0
    %106 = vmatprep.subr.bf16.mxu0 0
    %107 = vmatpush1.bf16.msra.mxu0 0
    %108 = vmatprep.mubr.bf16.mxu0 0
    %109 = vmatmul.mubr.bf16.gmra.mrb[0].mxu0 %v74
    %v110 = vpop.f32.mrb[0].mxu0
    %v111 = vadd.f32 0.0, %v110
    %v112 = vpop.f32.mrb[0].mxu0
    %v113 = vpop.f32.mrb[0].mxu0
    %v114 = vadd.f32 0.0, %v113
    %v115 = vpop.f32.mrb[0].mxu0
    %116 = vdwg.mxu0
    %v117 = vadd.f32 %v51, %v111
    %v118 = vadd.f32 %v52, %v114
    %vm119 = vcmask 785408
    %120 = vst.msk [vmem:[#allocation2] sm:$0xff] %vm119, %v117
    %121 = vst.msk [vmem:[#allocation2 + $0x8] sm:$0xff] %vm119, %v118
    // Predicated region
    $region26: #{tpu_custom_call.1} parent=1 // pred_check
      %p122 = pneg %p44
    $region27: #{tpu_custom_call.1} parent=1 // pred_check_branch
      %124 = sbr.rel (%p122) target = $region29
    $region28: #{tpu_custom_call.1} parent=1 // pred_region
      %v125 = vld [vmem:[#allocation2] sm:$0xff]
      %v126 = vld [vmem:[#allocation2 + $0x8] sm:$0xff]
      %v127 = vld [vmem:[%s2] sm:$0x1]
      %v129 = vlaneseq
      %v130 = vshrl.u32 %v129, 7
      %v131 = vsub.s32 0, %v130
      %v132 = vrot.slane %v127, %v131
      %v134 = vadd.f32 %v125, %v132
      %v135 = vadd.f32 %v126, %v132
      %136 = vst.msk [vmem:[#allocation8] sm:$0xff] %vm119, %v134
      %137 = vst.msk [vmem:[#allocation8 + $0x8] sm:$0xff] %vm119, %v135
    $region29: #{tpu_custom_call.1} parent=1 // pred_fallthru
      _
    // Predicated region
    $region30: #{tpu_custom_call.1} parent=1 // pred_check
      _
    $region31: #{tpu_custom_call.1} parent=1 // pred_check_branch
      %139 = sbr.rel (0) target = $region33
    $region32: #{tpu_custom_call.1} parent=1 // pred_region
      %s141 = ssub.s32 256, 256
      %142 = vsyncadd [#allocation5], %s141
      %s143 = sshll.u32 [#allocation8], 4
      %s144 = int_to_ptr.vmem [resolvable:$true] %s143
      %149 = dma.vmem_to_hbm [thread:$0]  %s144, 256, %s3, [#allocation5], 128, 128, 8
    $region33: #{tpu_custom_call.1} parent=1 // pred_fallthru
      _
    // Predicated region
    $region34: #{tpu_custom_call.1} parent=1 // pred_check
      _
    $region35: #{tpu_custom_call.1} parent=1 // pred_check_branch
      %151 = sbr.rel (0) target = $region37
    $region36: #{tpu_custom_call.1} parent=1 // pred_region
      %152 = dma.done [#allocation5], 256
    $region37: #{tpu_custom_call.1} parent=1 // pred_fallthru
      _
    %153 = vsyncpa [#allocation4], 1
    %154 = vsyncpa [#allocation7], 1
    %155 = vsyncpa [#allocation5], 1

</llo_original>
